<compile_context>
chip_gen: v5e
topology: v5e:2x2
jax: 0.10.0
libtpu: 0.0.40
codegen_flags: <defaults>
</compile_context>

<pallas_src>
import math

import jax
import jax.numpy as jnp
from jax.experimental import pallas as pl
from jax.experimental.pallas import tpu as pltpu


# ---------------------------------------------------------------------------
# helpers
# ---------------------------------------------------------------------------

def _cdiv(a: int, b: int) -> int:
    return -(-a // b)


def _round_up(x: int, m: int) -> int:
    return _cdiv(x, m) * m


def _sublane(dtype) -> int:
    # sublane packing granularity: f32 -> 8, bf16 -> 16, int8/fp8 -> 32
    return {4: 8, 2: 16, 1: 32}.get(jnp.dtype(dtype).itemsize, 8)


# Largest K handled in a single MXU pass (block last-dim == full K, no padding,
# no accumulator).  Working set at tm=512, tn<=256, f32:
#   2*tm*K*4 + 2*K*tn*4 + tm*tn*4  <= ~12.5 MiB, under v5e's 16 MiB scoped
# VMEM default and well under v6e (32 MiB) / v7x (32 MiB scoped of 64 MiB).
_SINGLE_K_MAX = 2048
# Candidate K tiles for the multi-pass path (must divide round_up(D, 128)).
_MULTI_K_TILES = (2048, 1024, 512, 256, 128)


# ---------------------------------------------------------------------------
# kernels
# ---------------------------------------------------------------------------

def _mm_single_k_kernel(x_ref, w_ref, o_ref):
    # One K pass: no accumulator scratch, no init/finalize branches.
    o_ref[...] = jnp.dot(
        x_ref[...], w_ref[...], preferred_element_type=jnp.float32
    ).astype(o_ref.dtype)


def _mm_multi_k_inplace_kernel(x_ref, w_ref, o_ref):
    # f32 output: accumulate straight into the resident output block
    # (the out index_map ignores k, so the block stays in VMEM across K).
    p = jnp.dot(x_ref[...], w_ref[...], preferred_element_type=jnp.float32)

    @pl.when(pl.program_id(2) == 0)
    def _init():
        o_ref[...] = p

    @pl.when(pl.program_id(2) > 0)
    def _acc():
        o_ref[...] += p


def _mm_multi_k_scratch_kernel(x_ref, w_ref, o_ref, acc_ref):
    # Non-f32 output: f32 VMEM accumulator, single cast/store at the end.
    @pl.when(pl.program_id(2) == 0)
    def _init():
        acc_ref[...] = jnp.zeros_like(acc_ref)

    acc_ref[...] += jnp.dot(
        x_ref[...], w_ref[...], preferred_element_type=jnp.float32
    )

    @pl.when(pl.program_id(2) == pl.num_programs(2) - 1)
    def _finalize():
        o_ref[...] = acc_ref[...].astype(o_ref.dtype)


# ---------------------------------------------------------------------------
# wrapper
# ---------------------------------------------------------------------------

def linear_forward_kn(
    x,
    w_kn,
    *,
    tm: int = 512,
    tn: int = 256,
    compute_dtype=None,
    vmem_limit_bytes: int | None = None,
):
    """y = x @ w_kn with x:(B, D), w_kn:(D, O) (weight already in the
    MXU-native (K, N) orientation).  Returns (B, O) in x's original dtype."""
    B, D = x.shape
    D2, O = w_kn.shape
    assert D == D2, "feature dim mismatch"
    out_dtype = x.dtype

    if compute_dtype is not None:  # optional bf16 streaming (memory-bound win)
        x = x.astype(compute_dtype)
        w_kn = w_kn.astype(compute_dtype)

    sub = _sublane(x.dtype)

    # ---- M tiling: never materialize a padded copy of x -------------------
    if B <= tm:
        tm = B                        # full-dim block is always a legal block
    grid_m = _cdiv(B, tm)
    # v7x megacore: give the "parallel" M axis >= 2 blocks so both TensorCores
    # get work (costs only one extra ~0.35us step on 1-TC chips).
    if grid_m == 1 and B >= 256:
        tm = _round_up(_cdiv(B, 2), sub)
        grid_m = _cdiv(B, tm)

    # ---- N tiling ----------------------------------------------------------
    if O <= tn:
        tn = O                        # full-dim block (tiny output slab)
    grid_n = _cdiv(O, tn)

    # ---- K tiling: pad (zeros) only when K needs multiple passes, and only
    #      to the 128-lane granularity, never to a full tile multiple. -------
    if D <= _SINGLE_K_MAX:
        single_k = True
        tk, grid_k = D, 1
    else:
        single_k = False
        Dp = _round_up(D, 128)
        tk = next(t for t in _MULTI_K_TILES if Dp % t == 0)
        grid_k = Dp // tk
        if Dp != D:
            # Reduction axis must be exactly covered by zeros (stale VMEM in a
            # K tail would multiply valid weight columns).
            x = jnp.pad(x, ((0, 0), (0, Dp - D)))
            w_kn = jnp.pad(w_kn, ((0, Dp - D), (0, 0)))

    cost = pl.CostEstimate(
        flops=2 * B * O * D,
        transcendentals=0,
        bytes_accessed=(
            grid_n * x.size * x.dtype.itemsize          # x streamed per N block
            + grid_m * w_kn.size * w_kn.dtype.itemsize  # W streamed per M block
            + B * O * jnp.dtype(out_dtype).itemsize     # output written once
        ),
    )

    if single_k:
        grid = (grid_m, grid_n)
        in_specs = [
            pl.BlockSpec((tm, tk), lambda i, j: (i, 0)),
            pl.BlockSpec((tk, tn), lambda i, j: (0, j)),
        ]
        out_spec = pl.BlockSpec((tm, tn), lambda i, j: (i, j))
        kernel = _mm_single_k_kernel
        scratch = []
        semantics = ("parallel", "parallel")
    else:
        grid = (grid_m, grid_n, grid_k)  # reduction axis last
        in_specs = [
            pl.BlockSpec((tm, tk), lambda i, j, k: (i, k)),
            pl.BlockSpec((tk, tn), lambda i, j, k: (k, j)),
        ]
        out_spec = pl.BlockSpec((tm, tn), lambda i, j, k: (i, j))
        if jnp.dtype(out_dtype) == jnp.dtype(jnp.float32):
            kernel = _mm_multi_k_inplace_kernel
            scratch = []
        else:
            kernel = _mm_multi_k_scratch_kernel
            scratch = [pltpu.VMEM((tm, tn), jnp.float32)]
        semantics = ("parallel", "parallel", "arbitrary")

    return pl.pallas_call(
        kernel,
        out_shape=jax.ShapeDtypeStruct((B, O), out_dtype),
        grid_spec=pltpu.PrefetchScalarGridSpec(
            num_scalar_prefetch=0,
            grid=grid,
            in_specs=in_specs,
            out_specs=out_spec,
            scratch_shapes=scratch,
        ),
        compiler_params=pltpu.CompilerParams(
            dimension_semantics=semantics,
            vmem_limit_bytes=vmem_limit_bytes,
        ),
        cost_estimate=cost,
    )(x, w_kn)


def linear_regression_forward(x, weight, **kw):
    """y = x @ weight.T with weight in the PyTorch (output_dim, input_dim)
    layout.  Prefer LinearRegressionPallas, which hoists the transpose."""
    return linear_forward_kn(x, weight.T, **kw)


def xavier_uniform(key, out_dim, in_dim, dtype=jnp.float32):
    # Matches torch.nn.init.xavier_uniform_ for a (out_dim, in_dim) weight.
    bound = math.sqrt(6.0 / (in_dim + out_dim))
    return jax.random.uniform(
        key, (out_dim, in_dim), dtype=dtype, minval=-bound, maxval=bound
    )


class LinearRegressionPallas:
    """Pallas mirror of STG.LinearRegression (bias-free nn.Linear)."""

    def __init__(self, input_dim, output_dim=1, *, key=None, dtype=jnp.float32):
        if key is None:
            key = jax.random.PRNGKey(0)
        self.weight = xavier_uniform(key, output_dim, input_dim, dtype)  # (O, D)
        # Hoisted once at init: MXU-native (K, N) layout reused every forward.
        self.w_kn = jnp.asarray(self.weight.T)

    def __call__(self, x, **kw):
        return linear_forward_kn(x, self.w_kn, **kw)


if __name__ == "__main__":
    key = jax.random.PRNGKey(0)
    k_x, k_w, k_x2, k_w2 = jax.random.split(key, 4)

    # ---- small shapes implied by the module (single-K fast path) ----------
    batch, input_dim, output_dim = 8, 32, 1
    model = LinearRegressionPallas(input_dim, output_dim, key=k_w)
    x = jax.random.normal(k_x, (batch, input_dim), dtype=jnp.float32)

    y = jax.block_until_ready(model(x))
    y_ref = x @ model.weight.T
    assert y.shape == (batch, output_dim)
    assert jnp.allclose(y, y_ref, atol=1e-5, rtol=1e-5)

    # ---- also exercise the multi-K (accumulate-into-output) path ----------
    B2, D2, O2 = 16, 2200, 8   # K > 2048 -> padded 2200 -> 2304, tk=256, 9 steps
    x2 = jax.random.normal(k_x2, (B2, D2), dtype=jnp.float32)
    w2 = xavier_uniform(k_w2, O2, D2)
    y2 = jax.block_until_ready(linear_regression_forward(x2, w2))
    y2_ref = jnp.dot(x2, w2.T, precision=jax.lax.Precision.HIGHEST)
    assert jnp.allclose(y2, y2_ref, atol=1e-3, rtol=1e-3)

    print("KERNEL_OK")
</pallas_src>

<mosaic_0001>
module attributes {stable_mosaic.version = 11 : i64} {
  func.func @_mm_single_k_kernel(%arg0: i32, %arg1: i32, %arg2: memref<8x32xf32, #tpu.memory_space<vmem>>, %arg3: memref<32x1xf32, #tpu.memory_space<vmem>>, %arg4: memref<8x1xf32, #tpu.memory_space<vmem>>) attributes {dimension_semantics = [#tpu.dimension_semantics<parallel>, #tpu.dimension_semantics<parallel>], iteration_bounds = array<i64: 1, 1>, scalar_prefetch = 0 : i64, scratch_operands = 0 : i64, tpu.core_type = #tpu.core_type<tc>, window_params = [{transform_indices = @transform_0, window_bounds = array<i64: 8, 32>}, {transform_indices = @transform_1, window_bounds = array<i64: 32, 1>}, {transform_indices = @transform_2, window_bounds = array<i64: 8, 1>}]} {
    %c0 = arith.constant 0 : index
    %c0_0 = arith.constant 0 : index
    %0 = vector.load %arg2[%c0, %c0_0] : memref<8x32xf32, #tpu.memory_space<vmem>>, vector<8x32xf32>
    %c0_1 = arith.constant 0 : index
    %c0_2 = arith.constant 0 : index
    %1 = vector.load %arg3[%c0_1, %c0_2] : memref<32x1xf32, #tpu.memory_space<vmem>>, vector<32x1xf32>
    %cst = arith.constant dense<0.000000e+00> : vector<8x1xf32>
    %2 = tpu.matmul %0, %1, %cst {dimension_numbers = #tpu.dot_dimension_numbers<[1], [0], [0], [1], [0, 0, 1, 1], [], []>} : vector<8x32xf32>, vector<32x1xf32>, vector<8x1xf32> -> vector<8x1xf32>
    %c0_3 = arith.constant 0 : index
    %c0_4 = arith.constant 0 : index
    %3 = vector.load %arg4[%c0_3, %c0_4] : memref<8x1xf32, #tpu.memory_space<vmem>>, vector<8x1xf32>
    tpu.vector_store %arg4[%c0_3, %c0_4], %2 {strides = array<i32>} : memref<8x1xf32, #tpu.memory_space<vmem>>, vector<8x1xf32>,
    return
  }
  func.func @transform_0(%arg0: i32, %arg1: i32) -> (i32, i32) {
    %c0_i32 = arith.constant 0 : i32
    %c0_i32_0 = arith.constant 0 : i32
    return %arg0, %c0_i32 : i32, i32
  }
  func.func @transform_1(%arg0: i32, %arg1: i32) -> (i32, i32) {
    %c0_i32 = arith.constant 0 : i32
    %c0_i32_0 = arith.constant 0 : i32
    return %c0_i32, %arg1 : i32, i32
  }
  func.func @transform_2(%arg0: i32, %arg1: i32) -> (i32, i32) {
    %c0_i32 = arith.constant 0 : i32
    return %arg0, %arg1 : i32, i32
  }
}

</mosaic_0001>

<llo_original>
// kernel: tpu_custom_call.1
$region0: #{tpu_custom_call.1}
  #allocation0 [shape = 'u32[]', space=smem, size = 0x4, offset = 0x4, fixed_abs, tag = 'smem constant byte address 0x4 - core index']
  #allocation1 [shape = 'u32[72,128]{1,0:T(1,128)}', space=vmem, size = 0x9000, scoped, tag = 'internal scratch']
  %s0 = inlined_call_operand.vmem [shape: f32[8,32], index: 0, kind: input, shape index: {}]
  %s1 = inlined_call_operand.vmem [shape: f32[32,1], index: 1, kind: input, shape index: {}]
  %s2 = inlined_call_operand.vmem [shape: f32[8,1], index: 2, kind: output, shape index: {}]
  %s3 = sld [smem:[#allocation0]]
  $region18: #{tpu_custom_call.1} parent=0
    _
  %s5 = ssub.s32 1, %s3
  %s6 = scalar_select 0, %s5, %s3
  // Predicated region
  $region2: #{tpu_custom_call.1} parent=0 // pred_check
    _
  $region3: #{tpu_custom_call.1} parent=0 // pred_check_branch
    %8 = sbr.rel (0) target = $region5
  $region4: #{tpu_custom_call.1} parent=0 // pred_region
    _
  $region5: #{tpu_custom_call.1} parent=0 // pred_fallthru
    _
  // Predicated region
  $region6: #{tpu_custom_call.1} parent=0 // pred_check
    _
  $region7: #{tpu_custom_call.1} parent=0 // pred_check_branch
    %10 = sbr.rel (0) target = $region9
  $region8: #{tpu_custom_call.1} parent=0 // pred_region
    _
  $region9: #{tpu_custom_call.1} parent=0 // pred_fallthru
    _
  %v11 = vld [vmem:[%s0] sm:$0xff]
  %v12 = vld [vmem:[%s1] sm:$0xff]
  %v13 = vld [vmem:[%s1 + $0x8] sm:$0xff]
  %v14 = vld [vmem:[%s1 + $0x10] sm:$0xff]
  %v15 = vld [vmem:[%s1 + $0x18] sm:$0xff]
  %vm16 = vcmask 261120
  %v18 = vsel %vm16, %v11, 0
  %20 = vmatpush.msra.mxu0 0.0
  %21 = vmatpush.msra.mxu0 0.0
  %22 = vmatpush.msra.mxu0 0.0
  %23 = vmatpush.msra.mxu0 0.0
  %24 = vmatpush.msra.mxu0 0.0
  %25 = vmatpush.msra.mxu0 0.0
  %26 = vmatpush.msra.mxu0 0.0
  %27 = vmatpush.msra.mxu0 0.0
  %28 = vmatpush.msra.mxu0 0.0
  %29 = vmatpush.msra.mxu0 0.0
  %30 = vmatpush.msra.mxu0 0.0
  %31 = vmatpush.msra.mxu0 0.0
  %32 = vmatpush.msra.mxu0 %v15
  %33 = vmatpush.msra.mxu0 %v14
  %34 = vmatpush.msra.mxu0 %v13
  %35 = vmatpush.msra.mxu0 %v12
  %36 = vmatmul.f32.gmra.mxu0 %v18
  %v37 = vpop.f32.mrf.mxu0
  %v38 = vadd.f32 0.0, %v37
  %39 = vdwg.mxu0
  %vm40 = vcmask 7168
  %41 = vst.msk [vmem:[%s2] sm:$0xff] %vm40, %v38
  // Predicated region
  $region10: #{tpu_custom_call.1} parent=0 // pred_check
    _
  $region11: #{tpu_custom_call.1} parent=0 // pred_check_branch
    %43 = sbr.rel (0) target = $region13
  $region12: #{tpu_custom_call.1} parent=0 // pred_region
    _
  $region13: #{tpu_custom_call.1} parent=0 // pred_fallthru
    _
  // Predicated region
  $region14: #{tpu_custom_call.1} parent=0 // pred_check
    _
  $region15: #{tpu_custom_call.1} parent=0 // pred_check_branch
    %45 = sbr.rel (0) target = $region17
  $region16: #{tpu_custom_call.1} parent=0 // pred_region
    _
  $region17: #{tpu_custom_call.1} parent=0 // pred_fallthru
    _

</llo_original>
